<compile_context>
chip_gen: v5e
topology: v5e:2x2
jax: 0.10.0
libtpu: 0.0.40
codegen_flags: <defaults>
</compile_context>

<pallas_src>
import functools

import jax
import jax.numpy as jnp
from jax import lax
from jax.experimental import pallas as pl
from jax.experimental.pallas import tpu as pltpu


def _round_up(n, m):
    return ((n + m - 1) // m) * m


def rnn_kernel(x_ref, wih_ref, whh_ref, b_ref, wfc_ref, bfc_ref,
               out_ref, hid_ref, h_scr, xw_scr, *,
               seq_len, chunk, batch, unroll, mask_tail):
    """One grid step = one time-chunk of `chunk` timesteps.

    x_ref is the (chunk*batch, I) time-major slab for this chunk: timestep t of
    the chunk is the contiguous sublane-aligned row slab [t*batch, (t+1)*batch).
    h_scr persists across grid steps and carries the recurrent state.
    """
    c = pl.program_id(0)

    @pl.when(c == 0)
    def _():
        h_scr[...] = jnp.zeros_like(h_scr)

    # Hoisted (non-recurrent) input projection + bias for the whole chunk in one
    # MXU matmul, off the serial critical path.  Padded batch rows only pick up
    # the bias; they are independent and sliced off in the wrapper.
    xw_scr[...] = (jnp.dot(x_ref[...], wih_ref[...],
                           preferred_element_type=jnp.float32)
                   + b_ref[...])

    def step(t, h):
        row = pl.multiple_of(t * batch, batch)          # sublane-aligned start
        # W_hh is streamed from VMEM each step (no full-weight vreg hoist).
        pre = xw_scr[pl.ds(row, batch), :] + jnp.dot(
            h, whh_ref[...], preferred_element_type=jnp.float32)
        h_new = jnp.tanh(pre)
        if mask_tail:
            valid = (c * chunk + t) < seq_len
            h_new = jnp.where(valid, h_new, h)
        return h_new

    h_scr[...] = lax.fori_loop(0, chunk, step, h_scr[...], unroll=unroll)

    @pl.when(c == pl.num_programs(0) - 1)
    def _():
        h = h_scr[...]
        hid_ref[...] = h.astype(hid_ref.dtype)
        out_ref[...] = (jnp.dot(h, wfc_ref[...],
                                preferred_element_type=jnp.float32)
                        + bfc_ref[...]).astype(out_ref.dtype)


def rnn_forward(x, w_ih, w_hh, b_ih, b_hh, w_fc, b_fc, *, time_chunk=64):
    """x: (B, T, I). Weights pre-transposed: (I,H), (H,H), (H,O).

    Returns (out (B, O), hidden (1, B, H)) matching PyTorch RNN + Linear.
    """
    B, T, I = x.shape
    H = w_hh.shape[0]
    O = w_fc.shape[1]

    B_pad = _round_up(max(B, 8), 8)        # sublane-align rows
    H_pad = _round_up(max(H, 128), 128)    # lane-dense hidden state
    O_pad = _round_up(max(O, 128), 128)    # lane-dense logits

    Tc = min(T, time_chunk)                # timesteps per grid step
    T_pad = _round_up(T, Tc)
    n_chunks = T_pad // Tc
    mask_tail = (T_pad != T)               # guard padded timesteps in-kernel
    unroll = min(Tc, 8)

    f32 = jnp.float32
    # Zero padding keeps padded hidden/logit columns exactly zero (tanh(0)=0 and
    # zero weight rows/cols contribute nothing), so slicing back is exact.
    wih_p = jnp.zeros((I, H_pad), f32).at[:, :H].set(w_ih.astype(f32))
    whh_p = jnp.zeros((H_pad, H_pad), f32).at[:H, :H].set(w_hh.astype(f32))
    b_p = jnp.zeros((1, H_pad), f32).at[0, :H].set((b_ih + b_hh).astype(f32))
    wfc_p = jnp.zeros((H_pad, O_pad), f32).at[:H, :O].set(w_fc.astype(f32))
    bfc_p = jnp.zeros((1, O_pad), f32).at[0, :O].set(b_fc.astype(f32))

    # Time-major, batch padded, flattened to (T_pad*B_pad, I): each grid step
    # streams one contiguous (Tc*B_pad, I) slab; padded timesteps are zeros and
    # are masked in the kernel when T % Tc != 0.
    x_tbi = jnp.transpose(x.astype(f32), (1, 0, 2))                       # (T, B, I)
    x_tbi = jnp.pad(x_tbi, ((0, T_pad - T), (0, B_pad - B), (0, 0)))      # (T_pad, B_pad, I)
    x2d = x_tbi.reshape(T_pad * B_pad, I)

    kernel = functools.partial(rnn_kernel, seq_len=T, chunk=Tc, batch=B_pad,
                               unroll=unroll, mask_tail=mask_tail)

    # Explicit VMEM budget with headroom (scoped defaults are far below physical).
    vmem_bytes = 4 * (
        2 * Tc * B_pad * I                              # x chunk, double-buffered
        + I * H_pad + H_pad * H_pad + H_pad             # W_ih, W_hh, bias
        + H_pad * O_pad + O_pad                         # W_fc, b_fc
        + 2 * B_pad * (H_pad + O_pad)                   # outputs
        + B_pad * H_pad + Tc * B_pad * H_pad            # h_scr, xw_scr
    )
    vmem_limit = min(int(1.5 * vmem_bytes) + (4 << 20), 64 << 20)

    out_pad, hid_pad = pl.pallas_call(
        kernel,
        out_shape=(jax.ShapeDtypeStruct((B_pad, O_pad), f32),
                   jax.ShapeDtypeStruct((B_pad, H_pad), f32)),
        grid=(n_chunks,),
        in_specs=[
            pl.BlockSpec((Tc * B_pad, I), lambda c: (c, 0)),   # streamed x chunk
            pl.BlockSpec((I, H_pad), lambda c: (0, 0)),        # W_ih (resident)
            pl.BlockSpec((H_pad, H_pad), lambda c: (0, 0)),    # W_hh (resident)
            pl.BlockSpec((1, H_pad), lambda c: (0, 0)),        # bias (resident)
            pl.BlockSpec((H_pad, O_pad), lambda c: (0, 0)),    # W_fc (resident)
            pl.BlockSpec((1, O_pad), lambda c: (0, 0)),        # b_fc (resident)
        ],
        out_specs=(pl.BlockSpec((B_pad, O_pad), lambda c: (0, 0)),
                   pl.BlockSpec((B_pad, H_pad), lambda c: (0, 0))),
        scratch_shapes=[pltpu.VMEM((B_pad, H_pad), f32),        # carried hidden state
                        pltpu.VMEM((Tc * B_pad, H_pad), f32)],  # chunk x@W_ih + bias
        compiler_params=pltpu.CompilerParams(
            dimension_semantics=("arbitrary",),
            vmem_limit_bytes=vmem_limit),
    )(x2d, wih_p, whh_p, b_p, wfc_p, bfc_p)

    out = out_pad[:B, :O]
    hidden = hid_pad[:B, :H][None, :, :]   # (1, B, H) like PyTorch
    return out, hidden


def rnn_reference(x, w_ih, w_hh, b_ih, b_hh, w_fc, b_fc):
    """Pure-JAX reference matching torch semantics."""
    B, T, I = x.shape
    H = w_hh.shape[0]
    h = jnp.zeros((B, H), jnp.float32)
    for t in range(T):
        h = jnp.tanh(x[:, t, :] @ w_ih + h @ w_hh + b_ih + b_hh)
    out = h @ w_fc + b_fc
    return out, h[None]


if __name__ == "__main__":
    B, T, I, H, O = 2, 8, 16, 32, 8   # batch, seq, input_size, hidden_size, output_size

    key = jax.random.PRNGKey(0)
    ks = jax.random.split(key, 7)
    scale = 1.0 / jnp.sqrt(H)
    # Parameters stored transposed relative to PyTorch: (I, H), (H, H), (H, O).
    w_ih = jax.random.uniform(ks[0], (I, H), jnp.float32, -scale, scale)
    w_hh = jax.random.uniform(ks[1], (H, H), jnp.float32, -scale, scale)
    b_ih = jax.random.uniform(ks[2], (H,), jnp.float32, -scale, scale)
    b_hh = jax.random.uniform(ks[3], (H,), jnp.float32, -scale, scale)
    w_fc = jax.random.uniform(ks[4], (H, O), jnp.float32, -scale, scale)
    b_fc = jax.random.uniform(ks[5], (O,), jnp.float32, -scale, scale)
    x = jax.random.normal(ks[6], (B, T, I), jnp.float32)

    out, hidden = rnn_forward(x, w_ih, w_hh, b_ih, b_hh, w_fc, b_fc)
    jax.block_until_ready((out, hidden))

    ref_out, ref_hid = rnn_reference(x, w_ih, w_hh, b_ih, b_hh, w_fc, b_fc)
    assert out.shape == (B, O) and hidden.shape == (1, B, H)
    assert jnp.allclose(out, ref_out, atol=1e-5), "output mismatch vs reference"
    assert jnp.allclose(hidden, ref_hid, atol=1e-5), "hidden mismatch vs reference"

    print("KERNEL_OK")
</pallas_src>

<mosaic_0001>
module attributes {stable_mosaic.version = 11 : i64} {
  func.func @rnn_kernel(%arg0: i32, %arg1: memref<64x16xf32, #tpu.memory_space<vmem>>, %arg2: memref<16x128xf32, #tpu.memory_space<vmem>>, %arg3: memref<128x128xf32, #tpu.memory_space<vmem>>, %arg4: memref<1x128xf32, #tpu.memory_space<vmem>>, %arg5: memref<128x128xf32, #tpu.memory_space<vmem>>, %arg6: memref<1x128xf32, #tpu.memory_space<vmem>>, %arg7: memref<8x128xf32, #tpu.memory_space<vmem>>, %arg8: memref<8x128xf32, #tpu.memory_space<vmem>>, %arg9: memref<8x128xf32, #tpu.memory_space<vmem>>, %arg10: memref<64x128xf32, #tpu.memory_space<vmem>>) attributes {dimension_semantics = [#tpu.dimension_semantics<arbitrary>], iteration_bounds = array<i64: 1>, scalar_prefetch = 0 : i64, scratch_operands = 2 : i64, tpu.core_type = #tpu.core_type<tc>, window_params = [{transform_indices = @transform_0, window_bounds = array<i64: 64, 16>}, {pipeline_mode = #tpu.pipeline_mode<synchronous>, transform_indices = @transform_1, window_bounds = array<i64: 16, 128>}, {pipeline_mode = #tpu.pipeline_mode<synchronous>, transform_indices = @transform_2, window_bounds = array<i64: 128, 128>}, {pipeline_mode = #tpu.pipeline_mode<synchronous>, transform_indices = @transform_3, window_bounds = array<i64: 1, 128>}, {pipeline_mode = #tpu.pipeline_mode<synchronous>, transform_indices = @transform_4, window_bounds = array<i64: 128, 128>}, {pipeline_mode = #tpu.pipeline_mode<synchronous>, transform_indices = @transform_5, window_bounds = array<i64: 1, 128>}, {pipeline_mode = #tpu.pipeline_mode<synchronous>, transform_indices = @transform_6, window_bounds = array<i64: 8, 128>}, {pipeline_mode = #tpu.pipeline_mode<synchronous>, transform_indices = @transform_7, window_bounds = array<i64: 8, 128>}]} {
    %c0_i32 = arith.constant 0 : i32
    %0 = arith.cmpi eq, %arg0, %c0_i32 : i32
    %1 = arith.extui %0 : i1 to i32
    %c0_i32_0 = arith.constant 0 : i32
    %2 = arith.cmpi ne, %1, %c0_i32_0 : i32
    scf.if %2 {
      %cst_55 = arith.constant 0.000000e+00 : f32
      %79 = vector.broadcast %cst_55 : f32 to vector<8x128xf32>
      %c0_56 = arith.constant 0 : index
      %c0_57 = arith.constant 0 : index
      %80 = vector.load %arg9[%c0_56, %c0_57] : memref<8x128xf32, #tpu.memory_space<vmem>>, vector<8x128xf32>
      tpu.vector_store %arg9[%c0_56, %c0_57], %79 {strides = array<i32>} : memref<8x128xf32, #tpu.memory_space<vmem>>, vector<8x128xf32>,
    } else {
    }
    %c0 = arith.constant 0 : index
    %c0_1 = arith.constant 0 : index
    %3 = vector.load %arg1[%c0, %c0_1] : memref<64x16xf32, #tpu.memory_space<vmem>>, vector<64x16xf32>
    %c0_2 = arith.constant 0 : index
    %c0_3 = arith.constant 0 : index
    %4 = vector.load %arg2[%c0_2, %c0_3] : memref<16x128xf32, #tpu.memory_space<vmem>>, vector<16x128xf32>
    %cst = arith.constant dense<0.000000e+00> : vector<64x128xf32>
    %5 = tpu.matmul %3, %4, %cst {dimension_numbers = #tpu.dot_dimension_numbers<[1], [0], [0], [1], [0, 0, 1, 1], [], []>} : vector<64x16xf32>, vector<16x128xf32>, vector<64x128xf32> -> vector<64x128xf32>
    %c0_4 = arith.constant 0 : index
    %c0_5 = arith.constant 0 : index
    %6 = vector.load %arg4[%c0_4, %c0_5] : memref<1x128xf32, #tpu.memory_space<vmem>>, vector<1x128xf32>
    %7 = vector.broadcast %6 : vector<1x128xf32> to vector<64x128xf32>
    %8 = arith.addf %5, %7 : vector<64x128xf32>
    %c0_6 = arith.constant 0 : index
    %c0_7 = arith.constant 0 : index
    %9 = vector.load %arg10[%c0_6, %c0_7] : memref<64x128xf32, #tpu.memory_space<vmem>>, vector<64x128xf32>
    tpu.vector_store %arg10[%c0_6, %c0_7], %8 {strides = array<i32>} : memref<64x128xf32, #tpu.memory_space<vmem>>, vector<64x128xf32>,
    %c0_8 = arith.constant 0 : index
    %c0_9 = arith.constant 0 : index
    %10 = vector.load %arg9[%c0_8, %c0_9] : memref<8x128xf32, #tpu.memory_space<vmem>>, vector<8x128xf32>
    %c0_i32_10 = arith.constant 0 : i32
    %c8_i32 = arith.constant 8 : i32
    %11 = arith.muli %c0_i32_10, %c8_i32 : i32
    %12 = tpu.assume_multiple %11, 8 : i32
    %13 = arith.index_cast %12 : i32 to index
    %c0_11 = arith.constant 0 : index
    %14 = vector.load %arg10[%13, %c0_11] : memref<64x128xf32, #tpu.memory_space<vmem>>, vector<8x128xf32>
    %c0_12 = arith.constant 0 : index
    %c0_13 = arith.constant 0 : index
    %15 = vector.load %arg3[%c0_12, %c0_13] : memref<128x128xf32, #tpu.memory_space<vmem>>, vector<128x128xf32>
    %cst_14 = arith.constant dense<0.000000e+00> : vector<8x128xf32>
    %16 = tpu.matmul %10, %15, %cst_14 {dimension_numbers = #tpu.dot_dimension_numbers<[1], [0], [0], [1], [0, 0, 1, 1], [], []>} : vector<8x128xf32>, vector<128x128xf32>, vector<8x128xf32> -> vector<8x128xf32>
    %17 = arith.addf %14, %16 : vector<8x128xf32>
    %18 = math.tanh %17 : vector<8x128xf32>
    %c1_i32 = arith.constant 1 : i32
    %c8_i32_15 = arith.constant 8 : i32
    %19 = arith.muli %c1_i32, %c8_i32_15 : i32
    %20 = tpu.assume_multiple %19, 8 : i32
    %21 = arith.index_cast %20 : i32 to index
    %c0_16 = arith.constant 0 : index
    %22 = vector.load %arg10[%21, %c0_16] : memref<64x128xf32, #tpu.memory_space<vmem>>, vector<8x128xf32>
    %c0_17 = arith.constant 0 : index
    %c0_18 = arith.constant 0 : index
    %23 = vector.load %arg3[%c0_17, %c0_18] : memref<128x128xf32, #tpu.memory_space<vmem>>, vector<128x128xf32>
    %cst_19 = arith.constant dense<0.000000e+00> : vector<8x128xf32>
    %24 = tpu.matmul %18, %23, %cst_19 {dimension_numbers = #tpu.dot_dimension_numbers<[1], [0], [0], [1], [0, 0, 1, 1], [], []>} : vector<8x128xf32>, vector<128x128xf32>, vector<8x128xf32> -> vector<8x128xf32>
    %25 = arith.addf %22, %24 : vector<8x128xf32>
    %26 = math.tanh %25 : vector<8x128xf32>
    %c2_i32 = arith.constant 2 : i32
    %c8_i32_20 = arith.constant 8 : i32
    %27 = arith.muli %c2_i32, %c8_i32_20 : i32
    %28 = tpu.assume_multiple %27, 8 : i32
    %29 = arith.index_cast %28 : i32 to index
    %c0_21 = arith.constant 0 : index
    %30 = vector.load %arg10[%29, %c0_21] : memref<64x128xf32, #tpu.memory_space<vmem>>, vector<8x128xf32>
    %c0_22 = arith.constant 0 : index
    %c0_23 = arith.constant 0 : index
    %31 = vector.load %arg3[%c0_22, %c0_23] : memref<128x128xf32, #tpu.memory_space<vmem>>, vector<128x128xf32>
    %cst_24 = arith.constant dense<0.000000e+00> : vector<8x128xf32>
    %32 = tpu.matmul %26, %31, %cst_24 {dimension_numbers = #tpu.dot_dimension_numbers<[1], [0], [0], [1], [0, 0, 1, 1], [], []>} : vector<8x128xf32>, vector<128x128xf32>, vector<8x128xf32> -> vector<8x128xf32>
    %33 = arith.addf %30, %32 : vector<8x128xf32>
    %34 = math.tanh %33 : vector<8x128xf32>
    %c3_i32 = arith.constant 3 : i32
    %c8_i32_25 = arith.constant 8 : i32
    %35 = arith.muli %c3_i32, %c8_i32_25 : i32
    %36 = tpu.assume_multiple %35, 8 : i32
    %37 = arith.index_cast %36 : i32 to index
    %c0_26 = arith.constant 0 : index
    %38 = vector.load %arg10[%37, %c0_26] : memref<64x128xf32, #tpu.memory_space<vmem>>, vector<8x128xf32>
    %c0_27 = arith.constant 0 : index
    %c0_28 = arith.constant 0 : index
    %39 = vector.load %arg3[%c0_27, %c0_28] : memref<128x128xf32, #tpu.memory_space<vmem>>, vector<128x128xf32>
    %cst_29 = arith.constant dense<0.000000e+00> : vector<8x128xf32>
    %40 = tpu.matmul %34, %39, %cst_29 {dimension_numbers = #tpu.dot_dimension_numbers<[1], [0], [0], [1], [0, 0, 1, 1], [], []>} : vector<8x128xf32>, vector<128x128xf32>, vector<8x128xf32> -> vector<8x128xf32>
    %41 = arith.addf %38, %40 : vector<8x128xf32>
    %42 = math.tanh %41 : vector<8x128xf32>
    %c4_i32 = arith.constant 4 : i32
    %c8_i32_30 = arith.constant 8 : i32
    %43 = arith.muli %c4_i32, %c8_i32_30 : i32
    %44 = tpu.assume_multiple %43, 8 : i32
    %45 = arith.index_cast %44 : i32 to index
    %c0_31 = arith.constant 0 : index
    %46 = vector.load %arg10[%45, %c0_31] : memref<64x128xf32, #tpu.memory_space<vmem>>, vector<8x128xf32>
    %c0_32 = arith.constant 0 : index
    %c0_33 = arith.constant 0 : index
    %47 = vector.load %arg3[%c0_32, %c0_33] : memref<128x128xf32, #tpu.memory_space<vmem>>, vector<128x128xf32>
    %cst_34 = arith.constant dense<0.000000e+00> : vector<8x128xf32>
    %48 = tpu.matmul %42, %47, %cst_34 {dimension_numbers = #tpu.dot_dimension_numbers<[1], [0], [0], [1], [0, 0, 1, 1], [], []>} : vector<8x128xf32>, vector<128x128xf32>, vector<8x128xf32> -> vector<8x128xf32>
    %49 = arith.addf %46, %48 : vector<8x128xf32>
    %50 = math.tanh %49 : vector<8x128xf32>
    %c5_i32 = arith.constant 5 : i32
    %c8_i32_35 = arith.constant 8 : i32
    %51 = arith.muli %c5_i32, %c8_i32_35 : i32
    %52 = tpu.assume_multiple %51, 8 : i32
    %53 = arith.index_cast %52 : i32 to index
    %c0_36 = arith.constant 0 : index
    %54 = vector.load %arg10[%53, %c0_36] : memref<64x128xf32, #tpu.memory_space<vmem>>, vector<8x128xf32>
    %c0_37 = arith.constant 0 : index
    %c0_38 = arith.constant 0 : index
    %55 = vector.load %arg3[%c0_37, %c0_38] : memref<128x128xf32, #tpu.memory_space<vmem>>, vector<128x128xf32>
    %cst_39 = arith.constant dense<0.000000e+00> : vector<8x128xf32>
    %56 = tpu.matmul %50, %55, %cst_39 {dimension_numbers = #tpu.dot_dimension_numbers<[1], [0], [0], [1], [0, 0, 1, 1], [], []>} : vector<8x128xf32>, vector<128x128xf32>, vector<8x128xf32> -> vector<8x128xf32>
    %57 = arith.addf %54, %56 : vector<8x128xf32>
    %58 = math.tanh %57 : vector<8x128xf32>
    %c6_i32 = arith.constant 6 : i32
    %c8_i32_40 = arith.constant 8 : i32
    %59 = arith.muli %c6_i32, %c8_i32_40 : i32
    %60 = tpu.assume_multiple %59, 8 : i32
    %61 = arith.index_cast %60 : i32 to index
    %c0_41 = arith.constant 0 : index
    %62 = vector.load %arg10[%61, %c0_41] : memref<64x128xf32, #tpu.memory_space<vmem>>, vector<8x128xf32>
    %c0_42 = arith.constant 0 : index
    %c0_43 = arith.constant 0 : index
    %63 = vector.load %arg3[%c0_42, %c0_43] : memref<128x128xf32, #tpu.memory_space<vmem>>, vector<128x128xf32>
    %cst_44 = arith.constant dense<0.000000e+00> : vector<8x128xf32>
    %64 = tpu.matmul %58, %63, %cst_44 {dimension_numbers = #tpu.dot_dimension_numbers<[1], [0], [0], [1], [0, 0, 1, 1], [], []>} : vector<8x128xf32>, vector<128x128xf32>, vector<8x128xf32> -> vector<8x128xf32>
    %65 = arith.addf %62, %64 : vector<8x128xf32>
    %66 = math.tanh %65 : vector<8x128xf32>
    %c7_i32 = arith.constant 7 : i32
    %c8_i32_45 = arith.constant 8 : i32
    %67 = arith.muli %c7_i32, %c8_i32_45 : i32
    %68 = tpu.assume_multiple %67, 8 : i32
    %69 = arith.index_cast %68 : i32 to index
    %c0_46 = arith.constant 0 : index
    %70 = vector.load %arg10[%69, %c0_46] : memref<64x128xf32, #tpu.memory_space<vmem>>, vector<8x128xf32>
    %c0_47 = arith.constant 0 : index
    %c0_48 = arith.constant 0 : index
    %71 = vector.load %arg3[%c0_47, %c0_48] : memref<128x128xf32, #tpu.memory_space<vmem>>, vector<128x128xf32>
    %cst_49 = arith.constant dense<0.000000e+00> : vector<8x128xf32>
    %72 = tpu.matmul %66, %71, %cst_49 {dimension_numbers = #tpu.dot_dimension_numbers<[1], [0], [0], [1], [0, 0, 1, 1], [], []>} : vector<8x128xf32>, vector<128x128xf32>, vector<8x128xf32> -> vector<8x128xf32>
    %73 = arith.addf %70, %72 : vector<8x128xf32>
    %74 = math.tanh %73 : vector<8x128xf32>
    %c8_i32_50 = arith.constant 8 : i32
    %c0_51 = arith.constant 0 : index
    %c0_52 = arith.constant 0 : index
    %75 = vector.load %arg9[%c0_51, %c0_52] : memref<8x128xf32, #tpu.memory_space<vmem>>, vector<8x128xf32>
    tpu.vector_store %arg9[%c0_51, %c0_52], %74 {strides = array<i32>} : memref<8x128xf32, #tpu.memory_space<vmem>>, vector<8x128xf32>,
    %c0_i32_53 = arith.constant 0 : i32
    %76 = arith.cmpi eq, %arg0, %c0_i32_53 : i32
    %77 = arith.extui %76 : i1 to i32
    %c0_i32_54 = arith.constant 0 : i32
    %78 = arith.cmpi ne, %77, %c0_i32_54 : i32
    scf.if %78 {
      %c0_55 = arith.constant 0 : index
      %c0_56 = arith.constant 0 : index
      %79 = vector.load %arg9[%c0_55, %c0_56] : memref<8x128xf32, #tpu.memory_space<vmem>>, vector<8x128xf32>
      %c0_57 = arith.constant 0 : index
      %c0_58 = arith.constant 0 : index
      %80 = vector.load %arg8[%c0_57, %c0_58] : memref<8x128xf32, #tpu.memory_space<vmem>>, vector<8x128xf32>
      tpu.vector_store %arg8[%c0_57, %c0_58], %79 {strides = array<i32>} : memref<8x128xf32, #tpu.memory_space<vmem>>, vector<8x128xf32>,
      %c0_59 = arith.constant 0 : index
      %c0_60 = arith.constant 0 : index
      %81 = vector.load %arg5[%c0_59, %c0_60] : memref<128x128xf32, #tpu.memory_space<vmem>>, vector<128x128xf32>
      %cst_61 = arith.constant dense<0.000000e+00> : vector<8x128xf32>
      %82 = tpu.matmul %79, %81, %cst_61 {dimension_numbers = #tpu.dot_dimension_numbers<[1], [0], [0], [1], [0, 0, 1, 1], [], []>} : vector<8x128xf32>, vector<128x128xf32>, vector<8x128xf32> -> vector<8x128xf32>
      %c0_62 = arith.constant 0 : index
      %c0_63 = arith.constant 0 : index
      %83 = vector.load %arg6[%c0_62, %c0_63] : memref<1x128xf32, #tpu.memory_space<vmem>>, vector<1x128xf32>
      %84 = vector.broadcast %83 : vector<1x128xf32> to vector<8x128xf32>
      %85 = arith.addf %82, %84 : vector<8x128xf32>
      %c0_64 = arith.constant 0 : index
      %c0_65 = arith.constant 0 : index
      %86 = vector.load %arg7[%c0_64, %c0_65] : memref<8x128xf32, #tpu.memory_space<vmem>>, vector<8x128xf32>
      tpu.vector_store %arg7[%c0_64, %c0_65], %85 {strides = array<i32>} : memref<8x128xf32, #tpu.memory_space<vmem>>, vector<8x128xf32>,
    } else {
    }
    return
  }
  func.func @transform_0(%arg0: i32) -> (i32, i32) {
    %c0_i32 = arith.constant 0 : i32
    %c0_i32_0 = arith.constant 0 : i32
    return %arg0, %c0_i32 : i32, i32
  }
  func.func @transform_1(%arg0: i32) -> (i32, i32) {
    %c0_i32 = arith.constant 0 : i32
    %c0_i32_0 = arith.constant 0 : i32
    %c0_i32_1 = arith.constant 0 : i32
    return %c0_i32, %c0_i32_0 : i32, i32
  }
  func.func @transform_2(%arg0: i32) -> (i32, i32) {
    %c0_i32 = arith.constant 0 : i32
    %c0_i32_0 = arith.constant 0 : i32
    %c0_i32_1 = arith.constant 0 : i32
    return %c0_i32, %c0_i32_0 : i32, i32
  }
  func.func @transform_3(%arg0: i32) -> (i32, i32) {
    %c0_i32 = arith.constant 0 : i32
    %c0_i32_0 = arith.constant 0 : i32
    %c0_i32_1 = arith.constant 0 : i32
    return %c0_i32, %c0_i32_0 : i32, i32
  }
  func.func @transform_4(%arg0: i32) -> (i32, i32) {
    %c0_i32 = arith.constant 0 : i32
    %c0_i32_0 = arith.constant 0 : i32
    %c0_i32_1 = arith.constant 0 : i32
    return %c0_i32, %c0_i32_0 : i32, i32
  }
  func.func @transform_5(%arg0: i32) -> (i32, i32) {
    %c0_i32 = arith.constant 0 : i32
    %c0_i32_0 = arith.constant 0 : i32
    %c0_i32_1 = arith.constant 0 : i32
    return %c0_i32, %c0_i32_0 : i32, i32
  }
  func.func @transform_6(%arg0: i32) -> (i32, i32) {
    %c0_i32 = arith.constant 0 : i32
    %c0_i32_0 = arith.constant 0 : i32
    %c0_i32_1 = arith.constant 0 : i32
    return %c0_i32, %c0_i32_0 : i32, i32
  }
  func.func @transform_7(%arg0: i32) -> (i32, i32) {
    %c0_i32 = arith.constant 0 : i32
    %c0_i32_0 = arith.constant 0 : i32
    %c0_i32_1 = arith.constant 0 : i32
    return %c0_i32, %c0_i32_0 : i32, i32
  }
}

</mosaic_0001>

<llo_original>
// kernel: tpu_custom_call.1
$region0: #{tpu_custom_call.1}
  #allocation0 [shape = 'u32[]', space=smem, size = 0x4, offset = 0x4, fixed_abs, tag = 'smem constant byte address 0x4 - core index']
  #allocation1 [shape = 'u32[72,128]{1,0:T(1,128)}', space=vmem, size = 0x9000, scoped, tag = 'internal scratch']
  #allocation2 [shape = 'f32[8,128]{1,0:T(8,128)}', space=vmem, size = 0x1000, scoped, tag = 'scratch operand']
  #allocation3 [shape = 'f32[64,128]{1,0:T(8,128)}', space=vmem, size = 0x8000, scoped, tag = 'scratch operand']
  %s0 = inlined_call_operand.vmem [shape: f32[64,16], index: 0, kind: input, shape index: {}]
  %s1 = inlined_call_operand.vmem [shape: f32[16,128], index: 1, kind: input, shape index: {}]
  %s2 = inlined_call_operand.hbm [shape: f32[128,128], index: 2, kind: input, shape index: {}]
  %s3 = inlined_call_operand.vmem [shape: f32[1,128], index: 3, kind: input, shape index: {}]
  %s4 = inlined_call_operand.hbm [shape: f32[128,128], index: 4, kind: input, shape index: {}]
  %s5 = inlined_call_operand.vmem [shape: f32[1,128], index: 5, kind: input, shape index: {}]
  %s6 = inlined_call_operand.hbm [shape: f32[8,128], index: 6, kind: output, shape index: {0}]
  %s7 = inlined_call_operand.hbm [shape: f32[8,128], index: 7, kind: output, shape index: {1}]
  %8 = xla_tuple %s6, %s7
  %s9 = sld [smem:[#allocation0]]
  $region58: #{tpu_custom_call.1} parent=0
    _
  %s11 = ssub.s32 1, %s9
  %s12 = scalar_select 0, %s11, %s9
  $region1: #{tpu_custom_call.1} parent=0
    #allocation4 [shape = 'u8[65536]{0}', space=vmem, size = 0x10000, scoped, tag = 'input window, operand 2, single buffered']
    #allocation5 [shape = 's32[1]{0}', space=sflag, size = 0x4, scoped, tag = 'scoped memory for tpu_custom_call.1']
    #allocation6 [shape = 's32[1]{0}', space=sflag, size = 0x4, scoped, tag = 'scoped memory for tpu_custom_call.1']
    #allocation7 [shape = 'u8[65536]{0}', space=vmem, size = 0x10000, scoped, tag = 'input window, operand 4, single buffered']
    #allocation8 [shape = 's32[1]{0}', space=sflag, size = 0x4, scoped, tag = 'scoped memory for tpu_custom_call.1']
    #allocation9 [shape = 'u8[4096]{0}', space=vmem, size = 0x1000, scoped, tag = 'output window, operand 0, single buffered']
    #allocation10 [shape = 'u8[4096]{0}', space=vmem, size = 0x1000, scoped, tag = 'output window, operand 1, single buffered']
    #allocation11 [shape = 's32[1]{0}', space=sflag, size = 0x4, scoped, tag = 'scoped memory for tpu_custom_call.1']
    %13 = vsyncpa [#allocation5], 0
    %14 = vsyncpa [#allocation8], 0
    %15 = vsyncpa [#allocation6], 0
    %16 = vsyncpa [#allocation11], 0
    // Predicated region
    $region2: #{tpu_custom_call.1} parent=1 // pred_check
      _
    $region3: #{tpu_custom_call.1} parent=1 // pred_check_branch
      %18 = sbr.rel (0) target = $region5
    $region4: #{tpu_custom_call.1} parent=1 // pred_region
      _
    $region5: #{tpu_custom_call.1} parent=1 // pred_fallthru
      _
    // Predicated region
    $region6: #{tpu_custom_call.1} parent=1 // pred_check
      _
    $region7: #{tpu_custom_call.1} parent=1 // pred_check_branch
      %20 = sbr.rel (0) target = $region9
    $region8: #{tpu_custom_call.1} parent=1 // pred_region
      _
    $region9: #{tpu_custom_call.1} parent=1 // pred_fallthru
      _
    // Predicated region
    $region10: #{tpu_custom_call.1} parent=1 // pred_check
      _
    $region11: #{tpu_custom_call.1} parent=1 // pred_check_branch
      %22 = sbr.rel (0) target = $region13
    $region12: #{tpu_custom_call.1} parent=1 // pred_region
      %24 = vsyncadd [#allocation5], 0
      %s25 = sshll.u32 %s2, 4
      %s26 = int_to_ptr.hbm [resolvable:$true] %s25
      %s27 = sshll.u32 [#allocation4], 4
      %s28 = int_to_ptr.vmem [resolvable:$true] %s27
      %33 = dma.hbm_to_vmem [thread:$0]  %s26, 2048, %s28, [#allocation5], 128, 128, 8
    $region13: #{tpu_custom_call.1} parent=1 // pred_fallthru
      _
    // Predicated region
    $region14: #{tpu_custom_call.1} parent=1 // pred_check
      _
    $region15: #{tpu_custom_call.1} parent=1 // pred_check_branch
      %35 = sbr.rel (0) target = $region17
    $region16: #{tpu_custom_call.1} parent=1 // pred_region
      _
    $region17: #{tpu_custom_call.1} parent=1 // pred_fallthru
      _
    // Predicated region
    $region18: #{tpu_custom_call.1} parent=1 // pred_check
      _
    $region19: #{tpu_custom_call.1} parent=1 // pred_check_branch
      %37 = sbr.rel (0) target = $region21
    $region20: #{tpu_custom_call.1} parent=1 // pred_region
      %39 = vsyncadd [#allocation8], 0
      %s40 = sshll.u32 %s4, 4
      %s41 = int_to_ptr.hbm [resolvable:$true] %s40
      %s42 = sshll.u32 [#allocation7], 4
      %s43 = int_to_ptr.vmem [resolvable:$true] %s42
      %48 = dma.hbm_to_vmem [thread:$0]  %s41, 2048, %s43, [#allocation8], 128, 128, 8
    $region21: #{tpu_custom_call.1} parent=1 // pred_fallthru
      _
    // Predicated region
    $region22: #{tpu_custom_call.1} parent=1 // pred_check
      _
    $region23: #{tpu_custom_call.1} parent=1 // pred_check_branch
      %50 = sbr.rel (0) target = $region25
    $region24: #{tpu_custom_call.1} parent=1 // pred_region
      _
    $region25: #{tpu_custom_call.1} parent=1 // pred_fallthru
      _
    // Predicated region
    $region26: #{tpu_custom_call.1} parent=1 // pred_check
      _
    $region27: #{tpu_custom_call.1} parent=1 // pred_check_branch
      %52 = sbr.rel (0) target = $region29
    $region28: #{tpu_custom_call.1} parent=1 // pred_region
      %54 = dma.done [#allocation5], 2048
    $region29: #{tpu_custom_call.1} parent=1 // pred_fallthru
      _
    // Predicated region
    $region30: #{tpu_custom_call.1} parent=1 // pred_check
      _
    $region31: #{tpu_custom_call.1} parent=1 // pred_check_branch
      %56 = sbr.rel (0) target = $region33
    $region32: #{tpu_custom_call.1} parent=1 // pred_region
      %58 = dma.done [#allocation8], 2048
    $region33: #{tpu_custom_call.1} parent=1 // pred_fallthru
      _
    %p59 = scmp.eq.s32.totalorder 0, 0
    // Predicated region
    $region34: #{tpu_custom_call.1} parent=1 // pred_check
      %p60 = pneg %p59
    $region35: #{tpu_custom_call.1} parent=1 // pred_check_branch
      %62 = sbr.rel (%p60) target = $region37
    $region36: #{tpu_custom_call.1} parent=1 // pred_region
      %63 = vst [vmem:[#allocation2] sm:$0xff] 0.0
    $region37: #{tpu_custom_call.1} parent=1 // pred_fallthru
      _
    %v64 = vld [vmem:[%s0] sm:$0xff]
    %v65 = vld [vmem:[%s0 + $0x8] sm:$0xff]
    %v66 = vld [vmem:[%s0 + $0x10] sm:$0xff]
    %v67 = vld [vmem:[%s0 + $0x18] sm:$0xff]
    %v68 = vld [vmem:[%s0 + $0x20] sm:$0xff]
    %v69 = vld [vmem:[%s0 + $0x28] sm:$0xff]
    %v70 = vld [vmem:[%s0 + $0x30] sm:$0xff]
    %v71 = vld [vmem:[%s0 + $0x38] sm:$0xff]
    %v72 = vld [vmem:[%s1] sm:$0xff]
    %v73 = vld [vmem:[%s1 + $0x8] sm:$0xff]
    %v74 = vld [vmem:[%s3] sm:$0x1]
    %v76 = vperm.slane %v74, 0
    %vm78 = vcmask 130048
    %v80 = vsel %vm78, %v64, 0
    %v83 = vsel %vm78, %v65, 0
    %v86 = vsel %vm78, %v66, 0
    %v89 = vsel %vm78, %v67, 0
    %v92 = vsel %vm78, %v68, 0
    %v95 = vsel %vm78, %v69, 0
    %v98 = vsel %vm78, %v70, 0
    %v101 = vsel %vm78, %v71, 0
    %103 = vmatpush.msra.mxu0 0.0
    %104 = vmatpush.msra.mxu0 0.0
    %105 = vmatpush.msra.mxu0 0.0
    %106 = vmatpush.msra.mxu0 0.0
    %107 = vmatpush.msra.mxu0 0.0
    %108 = vmatpush.msra.mxu0 0.0
    %109 = vmatpush.msra.mxu0 0.0
    %110 = vmatpush.msra.mxu0 0.0
    %111 = vmatpush.msra.mxu0 0.0
    %112 = vmatpush.msra.mxu0 0.0
    %113 = vmatpush.msra.mxu0 0.0
    %114 = vmatpush.msra.mxu0 0.0
    %115 = vmatpush.msra.mxu0 0.0
    %116 = vmatpush.msra.mxu0 0.0
    %117 = vmatpush.msra.mxu0 %v73
    %118 = vmatpush.msra.mxu0 %v72
    %119 = vmatmul.f32.gmra.mxu0 %v80
    %v120 = vpop.f32.mrf.mxu0
    %v121 = vadd.f32 %v76, %v120
    %122 = vmatmul.f32.gmra.mxu0 %v83
    %v123 = vpop.f32.mrf.mxu0
    %v124 = vadd.f32 %v76, %v123
    %125 = vmatmul.f32.gmra.mxu0 %v86
    %v126 = vpop.f32.mrf.mxu0
    %v127 = vadd.f32 %v76, %v126
    %128 = vmatmul.f32.gmra.mxu0 %v89
    %v129 = vpop.f32.mrf.mxu0
    %v130 = vadd.f32 %v76, %v129
    %131 = vmatmul.f32.gmra.mxu0 %v92
    %v132 = vpop.f32.mrf.mxu0
    %v133 = vadd.f32 %v76, %v132
    %134 = vmatmul.f32.gmra.mxu0 %v95
    %v135 = vpop.f32.mrf.mxu0
    %v136 = vadd.f32 %v76, %v135
    %137 = vmatmul.f32.gmra.mxu0 %v98
    %v138 = vpop.f32.mrf.mxu0
    %v139 = vadd.f32 %v76, %v138
    %140 = vmatmul.f32.gmra.mxu0 %v101
    %v141 = vpop.f32.mrf.mxu0
    %v142 = vadd.f32 %v76, %v141
    %143 = vdwg.mxu0
    %144 = vst [vmem:[#allocation3] sm:$0xff] %v121
    %145 = vst [vmem:[#allocation3 + $0x8] sm:$0xff] %v124
    %146 = vst [vmem:[#allocation3 + $0x10] sm:$0xff] %v127
    %147 = vst [vmem:[#allocation3 + $0x18] sm:$0xff] %v130
    %148 = vst [vmem:[#allocation3 + $0x20] sm:$0xff] %v133
    %149 = vst [vmem:[#allocation3 + $0x28] sm:$0xff] %v136
    %150 = vst [vmem:[#allocation3 + $0x30] sm:$0xff] %v139
    %151 = vst [vmem:[#allocation3 + $0x38] sm:$0xff] %v142
    %v152 = vld [vmem:[#allocation2] sm:$0xff]
    %v153 = vld [vmem:[#allocation3] sm:$0xff]
    %v154 = vld [vmem:[#allocation4] sm:$0xff]
    %v155 = vld [vmem:[#allocation4 + $0x8] sm:$0xff]
    %v156 = vld [vmem:[#allocation4 + $0x10] sm:$0xff]
    %v157 = vld [vmem:[#allocation4 + $0x18] sm:$0xff]
    %v158 = vld [vmem:[#allocation4 + $0x20] sm:$0xff]
    %v159 = vld [vmem:[#allocation4 + $0x28] sm:$0xff]
    %v160 = vld [vmem:[#allocation4 + $0x30] sm:$0xff]
    %v161 = vld [vmem:[#allocation4 + $0x38] sm:$0xff]
    %v162 = vld [vmem:[#allocation4 + $0x40] sm:$0xff]
    %v163 = vld [vmem:[#allocation4 + $0x48] sm:$0xff]
    %v164 = vld [vmem:[#allocation4 + $0x50] sm:$0xff]
    %v165 = vld [vmem:[#allocation4 + $0x58] sm:$0xff]
    %v166 = vld [vmem:[#allocation4 + $0x60] sm:$0xff]
    %v167 = vld [vmem:[#allocation4 + $0x68] sm:$0xff]
    %v168 = vld [vmem:[#allocation4 + $0x70] sm:$0xff]
    %v169 = vld [vmem:[#allocation4 + $0x78] sm:$0xff]
    %170 = vmatpush.msra.mxu0 %v169
    %171 = vmatpush.msra.mxu0 %v168
    %172 = vmatpush.msra.mxu0 %v167
    %173 = vmatpush.msra.mxu0 %v166
    %174 = vmatpush.msra.mxu0 %v165
    %175 = vmatpush.msra.mxu0 %v164
    %176 = vmatpush.msra.mxu0 %v163
    %177 = vmatpush.msra.mxu0 %v162
    %178 = vmatpush.msra.mxu0 %v161
    %179 = vmatpush.msra.mxu0 %v160
    %180 = vmatpush.msra.mxu0 %v159
    %181 = vmatpush.msra.mxu0 %v158
    %182 = vmatpush.msra.mxu0 %v157
    %183 = vmatpush.msra.mxu0 %v156
    %184 = vmatpush.msra.mxu0 %v155
    %185 = vmatpush.msra.mxu0 %v154
    %186 = vmatmul.f32.gmra.mxu0 %v152
    %v187 = vpop.f32.mrf.mxu0
    %v188 = vadd.f32 0.0, %v187
    %189 = vdwg.mxu0
    %v190 = vadd.f32 %v153, %v188
    %v191 = vtanh.pop %v190
    %s192 = scalar_lea.vmem [#allocation3], 8
    %v193 = vld [vmem:[%s192] sm:$0xff]
    %194 = vmatpush.msra.mxu0 %v169
    %195 = vmatpush.msra.mxu0 %v168
    %196 = vmatpush.msra.mxu0 %v167
    %197 = vmatpush.msra.mxu0 %v166
    %198 = vmatpush.msra.mxu0 %v165
    %199 = vmatpush.msra.mxu0 %v164
    %200 = vmatpush.msra.mxu0 %v163
    %201 = vmatpush.msra.mxu0 %v162
    %202 = vmatpush.msra.mxu0 %v161
    %203 = vmatpush.msra.mxu0 %v160
    %204 = vmatpush.msra.mxu0 %v159
    %205 = vmatpush.msra.mxu0 %v158
    %206 = vmatpush.msra.mxu0 %v157
    %207 = vmatpush.msra.mxu0 %v156
    %208 = vmatpush.msra.mxu0 %v155
    %209 = vmatpush.msra.mxu0 %v154
    %210 = vmatmul.f32.gmra.mxu0 %v191
    %v211 = vpop.f32.mrf.mxu0
    %v212 = vadd.f32 0.0, %v211
    %213 = vdwg.mxu0
    %v214 = vadd.f32 %v193, %v212
    %v215 = vtanh.pop %v214
    %s216 = scalar_lea.vmem [#allocation3], 16
    %v217 = vld [vmem:[%s216] sm:$0xff]
    %218 = vmatpush.msra.mxu0 %v169
    %219 = vmatpush.msra.mxu0 %v168
    %220 = vmatpush.msra.mxu0 %v167
    %221 = vmatpush.msra.mxu0 %v166
    %222 = vmatpush.msra.mxu0 %v165
    %223 = vmatpush.msra.mxu0 %v164
    %224 = vmatpush.msra.mxu0 %v163
    %225 = vmatpush.msra.mxu0 %v162
    %226 = vmatpush.msra.mxu0 %v161
    %227 = vmatpush.msra.mxu0 %v160
    %228 = vmatpush.msra.mxu0 %v159
    %229 = vmatpush.msra.mxu0 %v158
    %230 = vmatpush.msra.mxu0 %v157
    %231 = vmatpush.msra.mxu0 %v156
    %232 = vmatpush.msra.mxu0 %v155
    %233 = vmatpush.msra.mxu0 %v154
    %234 = vmatmul.f32.gmra.mxu0 %v215
    %v235 = vpop.f32.mrf.mxu0
    %v236 = vadd.f32 0.0, %v235
    %237 = vdwg.mxu0
    %v238 = vadd.f32 %v217, %v236
    %v239 = vtanh.pop %v238
    %s240 = scalar_lea.vmem [#allocation3], 24
    %v241 = vld [vmem:[%s240] sm:$0xff]
    %242 = vmatpush.msra.mxu0 %v169
    %243 = vmatpush.msra.mxu0 %v168
    %244 = vmatpush.msra.mxu0 %v167
    %245 = vmatpush.msra.mxu0 %v166
    %246 = vmatpush.msra.mxu0 %v165
    %247 = vmatpush.msra.mxu0 %v164
    %248 = vmatpush.msra.mxu0 %v163
    %249 = vmatpush.msra.mxu0 %v162
    %250 = vmatpush.msra.mxu0 %v161
    %251 = vmatpush.msra.mxu0 %v160
    %252 = vmatpush.msra.mxu0 %v159
    %253 = vmatpush.msra.mxu0 %v158
    %254 = vmatpush.msra.mxu0 %v157
    %255 = vmatpush.msra.mxu0 %v156
    %256 = vmatpush.msra.mxu0 %v155
    %257 = vmatpush.msra.mxu0 %v154
    %258 = vmatmul.f32.gmra.mxu0 %v239
    %v259 = vpop.f32.mrf.mxu0
    %v260 = vadd.f32 0.0, %v259
    %261 = vdwg.mxu0
    %v262 = vadd.f32 %v241, %v260
    %v263 = vtanh.pop %v262
    %s264 = scalar_lea.vmem [#allocation3], 32
    %v265 = vld [vmem:[%s264] sm:$0xff]
    %266 = vmatpush.msra.mxu0 %v169
    %267 = vmatpush.msra.mxu0 %v168
    %268 = vmatpush.msra.mxu0 %v167
    %269 = vmatpush.msra.mxu0 %v166
    %270 = vmatpush.msra.mxu0 %v165
    %271 = vmatpush.msra.mxu0 %v164
    %272 = vmatpush.msra.mxu0 %v163
    %273 = vmatpush.msra.mxu0 %v162
    %274 = vmatpush.msra.mxu0 %v161
    %275 = vmatpush.msra.mxu0 %v160
    %276 = vmatpush.msra.mxu0 %v159
    %277 = vmatpush.msra.mxu0 %v158
    %278 = vmatpush.msra.mxu0 %v157
    %279 = vmatpush.msra.mxu0 %v156
    %280 = vmatpush.msra.mxu0 %v155
    %281 = vmatpush.msra.mxu0 %v154
    %282 = vmatmul.f32.gmra.mxu0 %v263
    %v283 = vpop.f32.mrf.mxu0
    %v284 = vadd.f32 0.0, %v283
    %285 = vdwg.mxu0
    %v286 = vadd.f32 %v265, %v284
    %v287 = vtanh.pop %v286
    %s288 = scalar_lea.vmem [#allocation3], 40
    %v289 = vld [vmem:[%s288] sm:$0xff]
    %290 = vmatpush.msra.mxu0 %v169
    %291 = vmatpush.msra.mxu0 %v168
    %292 = vmatpush.msra.mxu0 %v167
    %293 = vmatpush.msra.mxu0 %v166
    %294 = vmatpush.msra.mxu0 %v165
    %295 = vmatpush.msra.mxu0 %v164
    %296 = vmatpush.msra.mxu0 %v163
    %297 = vmatpush.msra.mxu0 %v162
    %298 = vmatpush.msra.mxu0 %v161
    %299 = vmatpush.msra.mxu0 %v160
    %300 = vmatpush.msra.mxu0 %v159
    %301 = vmatpush.msra.mxu0 %v158
    %302 = vmatpush.msra.mxu0 %v157
    %303 = vmatpush.msra.mxu0 %v156
    %304 = vmatpush.msra.mxu0 %v155
    %305 = vmatpush.msra.mxu0 %v154
    %306 = vmatmul.f32.gmra.mxu0 %v287
    %v307 = vpop.f32.mrf.mxu0
    %v308 = vadd.f32 0.0, %v307
    %309 = vdwg.mxu0
    %v310 = vadd.f32 %v289, %v308
    %v311 = vtanh.pop %v310
    %s312 = scalar_lea.vmem [#allocation3], 48
    %v313 = vld [vmem:[%s312] sm:$0xff]
    %314 = vmatpush.msra.mxu0 %v169
    %315 = vmatpush.msra.mxu0 %v168
    %316 = vmatpush.msra.mxu0 %v167
    %317 = vmatpush.msra.mxu0 %v166
    %318 = vmatpush.msra.mxu0 %v165
    %319 = vmatpush.msra.mxu0 %v164
    %320 = vmatpush.msra.mxu0 %v163
    %321 = vmatpush.msra.mxu0 %v162
    %322 = vmatpush.msra.mxu0 %v161
    %323 = vmatpush.msra.mxu0 %v160
    %324 = vmatpush.msra.mxu0 %v159
    %325 = vmatpush.msra.mxu0 %v158
    %326 = vmatpush.msra.mxu0 %v157
    %327 = vmatpush.msra.mxu0 %v156
    %328 = vmatpush.msra.mxu0 %v155
    %329 = vmatpush.msra.mxu0 %v154
    %330 = vmatmul.f32.gmra.mxu0 %v311
    %v331 = vpop.f32.mrf.mxu0
    %v332 = vadd.f32 0.0, %v331
    %333 = vdwg.mxu0
    %v334 = vadd.f32 %v313, %v332
    %v335 = vtanh.pop %v334
    %s336 = scalar_lea.vmem [#allocation3], 56
    %v337 = vld [vmem:[%s336] sm:$0xff]
    %338 = vmatpush.msra.mxu0 %v169
    %339 = vmatpush.msra.mxu0 %v168
    %340 = vmatpush.msra.mxu0 %v167
    %341 = vmatpush.msra.mxu0 %v166
    %342 = vmatpush.msra.mxu0 %v165
    %343 = vmatpush.msra.mxu0 %v164
    %344 = vmatpush.msra.mxu0 %v163
    %345 = vmatpush.msra.mxu0 %v162
    %346 = vmatpush.msra.mxu0 %v161
    %347 = vmatpush.msra.mxu0 %v160
    %348 = vmatpush.msra.mxu0 %v159
    %349 = vmatpush.msra.mxu0 %v158
    %350 = vmatpush.msra.mxu0 %v157
    %351 = vmatpush.msra.mxu0 %v156
    %352 = vmatpush.msra.mxu0 %v155
    %353 = vmatpush.msra.mxu0 %v154
    %354 = vmatmul.f32.gmra.mxu0 %v335
    %v355 = vpop.f32.mrf.mxu0
    %v356 = vadd.f32 0.0, %v355
    %357 = vdwg.mxu0
    %v358 = vadd.f32 %v337, %v356
    %v359 = vtanh.pop %v358
    %360 = vst [vmem:[#allocation2] sm:$0xff] %v359
    // Predicated region
    $region38: #{tpu_custom_call.1} parent=1 // pred_check
      %p361 = pneg %p59
    $region39: #{tpu_custom_call.1} parent=1 // pred_check_branch
      %363 = sbr.rel (%p361) target = $region41
    $region40: #{tpu_custom_call.1} parent=1 // pred_region
      %v364 = vld [vmem:[#allocation2] sm:$0xff]
      %365 = vst [vmem:[#allocation10] sm:$0xff] %v364
      %v366 = vld [vmem:[#allocation7] sm:$0xff]
      %v367 = vld [vmem:[#allocation7 + $0x8] sm:$0xff]
      %v368 = vld [vmem:[#allocation7 + $0x10] sm:$0xff]
      %v369 = vld [vmem:[#allocation7 + $0x18] sm:$0xff]
      %v370 = vld [vmem:[#allocation7 + $0x20] sm:$0xff]
      %v371 = vld [vmem:[#allocation7 + $0x28] sm:$0xff]
      %v372 = vld [vmem:[#allocation7 + $0x30] sm:$0xff]
      %v373 = vld [vmem:[#allocation7 + $0x38] sm:$0xff]
      %v374 = vld [vmem:[#allocation7 + $0x40] sm:$0xff]
      %v375 = vld [vmem:[#allocation7 + $0x48] sm:$0xff]
      %v376 = vld [vmem:[#allocation7 + $0x50] sm:$0xff]
      %v377 = vld [vmem:[#allocation7 + $0x58] sm:$0xff]
      %v378 = vld [vmem:[#allocation7 + $0x60] sm:$0xff]
      %v379 = vld [vmem:[#allocation7 + $0x68] sm:$0xff]
      %v380 = vld [vmem:[#allocation7 + $0x70] sm:$0xff]
      %v381 = vld [vmem:[#allocation7 + $0x78] sm:$0xff]
      %v382 = vld [vmem:[%s5] sm:$0x1]
      %v384 = vperm.slane %v382, 0
      %386 = vmatpush.msra.mxu0 %v381
      %387 = vmatpush.msra.mxu0 %v380
      %388 = vmatpush.msra.mxu0 %v379
      %389 = vmatpush.msra.mxu0 %v378
      %390 = vmatpush.msra.mxu0 %v377
      %391 = vmatpush.msra.mxu0 %v376
      %392 = vmatpush.msra.mxu0 %v375
      %393 = vmatpush.msra.mxu0 %v374
      %394 = vmatpush.msra.mxu0 %v373
      %395 = vmatpush.msra.mxu0 %v372
      %396 = vmatpush.msra.mxu0 %v371
      %397 = vmatpush.msra.mxu0 %v370
      %398 = vmatpush.msra.mxu0 %v369
      %399 = vmatpush.msra.mxu0 %v368
      %400 = vmatpush.msra.mxu0 %v367
      %401 = vmatpush.msra.mxu0 %v366
      %402 = vmatmul.f32.gmra.mxu0 %v364
      %v403 = vpop.f32.mrf.mxu0
      %v404 = vadd.f32 %v384, %v403
      %405 = vdwg.mxu0
      %406 = vst [vmem:[#allocation9] sm:$0xff] %v404
    $region41: #{tpu_custom_call.1} parent=1 // pred_fallthru
      _
    // Predicated region
    $region42: #{tpu_custom_call.1} parent=1 // pred_check
      _
    $region43: #{tpu_custom_call.1} parent=1 // pred_check_branch
      %408 = sbr.rel (0) target = $region45
    $region44: #{tpu_custom_call.1} parent=1 // pred_region
      %410 = vsyncadd [#allocation6], 0
      %s412 = sshll.u32 [#allocation9], 4
      %s413 = int_to_ptr.vmem [resolvable:$true] %s412
      %s414 = sshll.u32 %s6, 4
      %s415 = int_to_ptr.hbm [resolvable:$true] %s414
      %417 = dma.vmem_to_hbm [thread:$0]  %s413, 128, %s415, [#allocation6]
    $region45: #{tpu_custom_call.1} parent=1 // pred_fallthru
      _
    // Predicated region
    $region46: #{tpu_custom_call.1} parent=1 // pred_check
      _
    $region47: #{tpu_custom_call.1} parent=1 // pred_check_branch
      %419 = sbr.rel (0) target = $region49
    $region48: #{tpu_custom_call.1} parent=1 // pred_region
      %421 = vsyncadd [#allocation11], 0
      %s423 = sshll.u32 [#allocation10], 4
      %s424 = int_to_ptr.vmem [resolvable:$true] %s423
      %s425 = sshll.u32 %s7, 4
      %s426 = int_to_ptr.hbm [resolvable:$true] %s425
      %428 = dma.vmem_to_hbm [thread:$0]  %s424, 128, %s426, [#allocation11]
    $region49: #{tpu_custom_call.1} parent=1 // pred_fallthru
      _
    // Predicated region
    $region50: #{tpu_custom_call.1} parent=1 // pred_check
      _
    $region51: #{tpu_custom_call.1} parent=1 // pred_check_branch
      %430 = sbr.rel (0) target = $region53
    $region52: #{tpu_custom_call.1} parent=1 // pred_region
      %432 = dma.done [#allocation6], 128
    $region53: #{tpu_custom_call.1} parent=1 // pred_fallthru
      _
    // Predicated region
    $region54: #{tpu_custom_call.1} parent=1 // pred_check
      _
    $region55: #{tpu_custom_call.1} parent=1 // pred_check_branch
      %434 = sbr.rel (0) target = $region57
    $region56: #{tpu_custom_call.1} parent=1 // pred_region
      %436 = dma.done [#allocation11], 128
    $region57: #{tpu_custom_call.1} parent=1 // pred_fallthru
      _
    %437 = vsyncpa [#allocation5], 1
    %438 = vsyncpa [#allocation8], 1
    %439 = vsyncpa [#allocation6], 1
    %440 = vsyncpa [#allocation11], 1

</llo_original>
